<compile_context>
chip_gen: v7x
topology: tpu7x:2x2x1
jax: 0.10.0
libtpu: 0.0.40
codegen_flags: <defaults>
</compile_context>

<pallas_src>
import jax
import jax.numpy as jnp
from jax.experimental import pallas as pl
from jax.experimental.pallas import tpu as pltpu


NEG_SLOPE = 0.01   # torch.nn.LeakyReLU default
LANE = 128         # TPU lane width


def _leaky_relu(x):
    # mul + max (2 VALU ops) instead of cmp + select + mul.
    return jnp.maximum(x, NEG_SLOPE * x)


def iqnet_kernel(x_ref, w1_ref, b1_ref, w2_ref, b2_ref, w3_ref, b3_ref, q_ref):
    """One block: (A, TB, in) obs + all stacked (bf16) weights -> (A, TB, actions)."""
    x = x_ref[...].astype(jnp.bfloat16)                      # cast only at the dot input
    h1 = jnp.einsum('abi,aio->abo', x, w1_ref[...],
                    preferred_element_type=jnp.float32)
    h1 = _leaky_relu(h1 + b1_ref[...])                       # f32 VALU math (v5e-safe)
    h2 = jnp.einsum('abi,aio->abo', h1.astype(jnp.bfloat16), w2_ref[...],
                    preferred_element_type=jnp.float32)
    h2 = _leaky_relu(h2 + b2_ref[...])                       # padded lanes stay exactly 0
    q = jnp.einsum('abi,aio->abo', h2.astype(jnp.bfloat16), w3_ref[...],
                   preferred_element_type=jnp.float32)
    q_ref[...] = (q + b3_ref[...]).astype(q_ref.dtype)       # unpadded (A, TB, actions) store


def init_params(key, n_agents, in_dim, actions, dtype=jnp.float32):
    """Deterministic synthetic init (torch-Linear-like uniform fan-in scaling).

    Layout is already (A, in, out) i.e. transposed vs. torch's (out, in).
    """
    dims = [(in_dim, 128), (128, 64), (64, actions)]
    params = {}
    keys = jax.random.split(key, 2 * len(dims))
    for li, (fan_in, fan_out) in enumerate(dims):
        bound = 1.0 / jnp.sqrt(float(fan_in))
        kw, kb = keys[2 * li], keys[2 * li + 1]
        params[f"w{li+1}"] = jax.random.uniform(
            kw, (n_agents, fan_in, fan_out), dtype, minval=-bound, maxval=bound)
        params[f"b{li+1}"] = jax.random.uniform(
            kb, (n_agents, 1, fan_out), dtype, minval=-bound, maxval=bound)
    return params


def prepare_params(params, matmul_dtype=jnp.bfloat16):
    """ONE-TIME pad + dtype cast, hoisted out of the forward hot path.

    - hidden-2 path (64) is zero-padded to 128 lanes (mathematically exact:
      padded w2/b2 columns are zero, LeakyReLU(0)=0, padded w3 rows multiply
      exact-zero lanes).
    - weights stored in bf16 (halves MXU passes + weight bytes); biases in f32.
    Call once and reuse the returned pytree for every forward call.
    """
    w1, b1 = params["w1"], params["b1"]
    w2, b2 = params["w2"], params["b2"]
    w3, b3 = params["w3"], params["b3"]
    h2 = w2.shape[-1]
    h2_p = max(LANE, ((h2 + LANE - 1) // LANE) * LANE)
    w2_p = jnp.pad(w2, ((0, 0), (0, 0), (0, h2_p - h2)))          # (A, 128, 128)
    b2_p = jnp.pad(b2, ((0, 0), (0, 0), (0, h2_p - h2)))          # (A, 1, 128)
    w3_p = jnp.pad(w3, ((0, 0), (0, h2_p - h2), (0, 0)))          # (A, 128, actions)
    return {
        "w1": w1.astype(matmul_dtype), "b1": b1.astype(jnp.float32),
        "w2": w2_p.astype(matmul_dtype), "b2": b2_p.astype(jnp.float32),
        "w3": w3_p.astype(matmul_dtype), "b3": b3.astype(jnp.float32),
    }


def iqnet_forward(obs, prepared, *, batch_block=None):
    """obs: (n_agents, batch, in_dim) f32; prepared: output of prepare_params.

    batch_block=None  -> gridless, fully VMEM-resident single invocation
                         (best latency for inference-sized batches, 1 TC).
    batch_block=TB    -> batch-tiled grid, "parallel" axis (v7x 2-TC sharding,
                         pipelined blocks for training-sized batches).
    Returns (n_agents, batch, actions) f32.
    """
    A, B, in_dim = obs.shape
    w1, b1 = prepared["w1"], prepared["b1"]
    w2, b2 = prepared["w2"], prepared["b2"]
    w3, b3 = prepared["w3"], prepared["b3"]
    h1 = w1.shape[-1]
    h2_p = w2.shape[-1]
    actions = w3.shape[-1]

    flops = 2 * A * B * (in_dim * h1 + h1 * h2_p + h2_p * actions)
    bytes_accessed = (obs.size * obs.dtype.itemsize
                      + sum(int(p.size) * p.dtype.itemsize
                            for p in (w1, b1, w2, b2, w3, b3))
                      + A * B * actions * 4)
    cost = pl.CostEstimate(flops=flops, transcendentals=0,
                           bytes_accessed=bytes_accessed)
    out_shape = jax.ShapeDtypeStruct((A, B, actions), jnp.float32)

    if batch_block is None or batch_block >= B:
        # Gridless: whole problem (<~1 MB at inference sizes) lives in VMEM at once.
        vmem = pl.BlockSpec(memory_space=pltpu.MemorySpace.VMEM)
        return pl.pallas_call(
            iqnet_kernel,
            out_shape=out_shape,
            in_specs=[vmem] * 7,
            out_specs=vmem,
            cost_estimate=cost,
        )(obs, w1, b1, w2, b2, w3, b3)

    # Batch-tiled path for large batches.
    assert batch_block % 8 == 0 and B % batch_block == 0, \
        "batch_block must be a multiple of 8 and divide the batch"

    def resident(shape):
        # Weights/biases: same block for every grid step -> stay VMEM-resident.
        return pl.BlockSpec(shape, lambda b: (0, 0, 0))

    grid_spec = pltpu.PrefetchScalarGridSpec(
        num_scalar_prefetch=0,
        grid=(B // batch_block,),
        in_specs=[pl.BlockSpec((A, batch_block, in_dim), lambda b: (0, b, 0)),
                  resident(w1.shape), resident(b1.shape),
                  resident(w2.shape), resident(b2.shape),
                  resident(w3.shape), resident(b3.shape)],
        out_specs=pl.BlockSpec((A, batch_block, actions), lambda b: (0, b, 0)),
    )
    return pl.pallas_call(
        iqnet_kernel,
        out_shape=out_shape,
        grid_spec=grid_spec,
        compiler_params=pltpu.CompilerParams(
            dimension_semantics=("parallel",)),
        cost_estimate=cost,
    )(obs, w1, b1, w2, b2, w3, b3)


def reference_forward_f32(obs, params):
    """Pure f32 reference (matches the torch module bit-for-bit semantics)."""
    def one(x, w1, b1, w2, b2, w3, b3):
        h1 = _leaky_relu(x @ w1 + b1)
        h2 = _leaky_relu(h1 @ w2 + b2)
        return h2 @ w3 + b3
    return jax.vmap(one)(obs, params["w1"], params["b1"], params["w2"],
                         params["b2"], params["w3"], params["b3"])


def reference_forward_prepared(obs, pp):
    """Reference that mirrors the kernel's bf16-operand / f32-accumulate math."""
    def one(x, w1, b1, w2, b2, w3, b3):
        h1 = _leaky_relu(jnp.dot(x.astype(jnp.bfloat16), w1,
                                 preferred_element_type=jnp.float32) + b1)
        h2 = _leaky_relu(jnp.dot(h1.astype(jnp.bfloat16), w2,
                                 preferred_element_type=jnp.float32) + b2)
        return jnp.dot(h2.astype(jnp.bfloat16), w3,
                       preferred_element_type=jnp.float32) + b3
    return jax.vmap(one)(obs, pp["w1"], pp["b1"], pp["w2"],
                         pp["b2"], pp["w3"], pp["b3"])


if __name__ == "__main__":
    n_agents, batch, in_dim, actions = 3, 8, 32, 5

    key = jax.random.PRNGKey(0)
    k_obs, k_par, k_obs_big = jax.random.split(key, 3)
    obs = jax.random.normal(k_obs, (n_agents, batch, in_dim), dtype=jnp.float32)
    params = init_params(k_par, n_agents, in_dim, actions)

    # One-time prep (padding + bf16 cast) — hoisted out of the per-step path.
    prepared = jax.tree_util.tree_map(jax.block_until_ready, prepare_params(params))

    fwd = jax.jit(iqnet_forward, static_argnames=("batch_block",))

    # --- inference-sized path: gridless, fully VMEM-resident ---
    q = jax.block_until_ready(fwd(obs, prepared))
    assert q.shape == (n_agents, batch, actions)

    q_ref_bf16 = reference_forward_prepared(obs, prepared)
    q_ref_f32 = reference_forward_f32(obs, params)
    assert jnp.allclose(q, q_ref_bf16, atol=2e-3, rtol=2e-3), "bf16-matched parity failed"
    assert jnp.allclose(q, q_ref_f32, atol=5e-2, rtol=5e-2), "f32 semantic parity failed"

    # --- training-sized path: batch-tiled grid ("parallel" axis for v7x 2 TCs) ---
    big_batch, tb = 2048, 512
    obs_big = jax.random.normal(k_obs_big, (n_agents, big_batch, in_dim),
                                dtype=jnp.float32)
    q_big = jax.block_until_ready(fwd(obs_big, prepared, batch_block=tb))
    assert q_big.shape == (n_agents, big_batch, actions)
    q_big_ref = reference_forward_prepared(obs_big, prepared)
    assert jnp.allclose(q_big, q_big_ref, atol=2e-3, rtol=2e-3), "tiled-path parity failed"

    print("KERNEL_OK")
</pallas_src>

<mosaic_0001>
module attributes {stable_mosaic.version = 11 : i64} {
  func.func @iqnet_kernel(%arg0: memref<3x8x32xf32, #tpu.memory_space<vmem>>, %arg1: memref<3x32x128xbf16, #tpu.memory_space<vmem>>, %arg2: memref<3x1x128xf32, #tpu.memory_space<vmem>>, %arg3: memref<3x128x128xbf16, #tpu.memory_space<vmem>>, %arg4: memref<3x1x128xf32, #tpu.memory_space<vmem>>, %arg5: memref<3x128x5xbf16, #tpu.memory_space<vmem>>, %arg6: memref<3x1x5xf32, #tpu.memory_space<vmem>>, %arg7: memref<3x8x5xf32, #tpu.memory_space<vmem>>) attributes {dimension_semantics = [], scalar_prefetch = 0 : i64, scratch_operands = 0 : i64, tpu.core_type = #tpu.core_type<tc>} {
    %c0 = arith.constant 0 : index
    %c0_0 = arith.constant 0 : index
    %c0_1 = arith.constant 0 : index
    %0 = vector.load %arg0[%c0, %c0_0, %c0_1] : memref<3x8x32xf32, #tpu.memory_space<vmem>>, vector<3x8x32xf32>
    %1 = arith.truncf %0 : vector<3x8x32xf32> to vector<3x8x32xbf16>
    %c0_2 = arith.constant 0 : index
    %c0_3 = arith.constant 0 : index
    %c0_4 = arith.constant 0 : index
    %2 = vector.load %arg1[%c0_2, %c0_3, %c0_4] : memref<3x32x128xbf16, #tpu.memory_space<vmem>>, vector<3x32x128xbf16>
    "tpu.trace_start"() <{level = 10 : i32, message = "abi,aio->abo"}> : () -> ()
    %cst = arith.constant dense<0.000000e+00> : vector<3x8x128xf32>
    %3 = tpu.matmul %1, %2, %cst {dimension_numbers = #tpu.dot_dimension_numbers<[2], [1], [1], [2], [0, 0, 0, 1, 1, 2], [0], [0]>} : vector<3x8x32xbf16>, vector<3x32x128xbf16>, vector<3x8x128xf32> -> vector<3x8x128xf32>
    "tpu.trace_stop"() : () -> ()
    %c0_5 = arith.constant 0 : index
    %c0_6 = arith.constant 0 : index
    %c0_7 = arith.constant 0 : index
    %4 = vector.load %arg2[%c0_5, %c0_6, %c0_7] : memref<3x1x128xf32, #tpu.memory_space<vmem>>, vector<3x1x128xf32>
    %5 = vector.broadcast %4 : vector<3x1x128xf32> to vector<3x8x128xf32>
    %6 = arith.addf %3, %5 : vector<3x8x128xf32>
    %cst_8 = arith.constant 0.00999999977 : f32
    %7 = vector.broadcast %cst_8 : f32 to vector<3x8x128xf32>
    %8 = arith.mulf %7, %6 : vector<3x8x128xf32>
    %9 = arith.maximumf %6, %8 : vector<3x8x128xf32>
    %10 = arith.truncf %9 : vector<3x8x128xf32> to vector<3x8x128xbf16>
    %c0_9 = arith.constant 0 : index
    %c0_10 = arith.constant 0 : index
    %c0_11 = arith.constant 0 : index
    %11 = vector.load %arg3[%c0_9, %c0_10, %c0_11] : memref<3x128x128xbf16, #tpu.memory_space<vmem>>, vector<3x128x128xbf16>
    "tpu.trace_start"() <{level = 10 : i32, message = "abi,aio->abo"}> : () -> ()
    %cst_12 = arith.constant dense<0.000000e+00> : vector<3x8x128xf32>
    %12 = tpu.matmul %10, %11, %cst_12 {dimension_numbers = #tpu.dot_dimension_numbers<[2], [1], [1], [2], [0, 0, 0, 1, 1, 2], [0], [0]>} : vector<3x8x128xbf16>, vector<3x128x128xbf16>, vector<3x8x128xf32> -> vector<3x8x128xf32>
    "tpu.trace_stop"() : () -> ()
    %c0_13 = arith.constant 0 : index
    %c0_14 = arith.constant 0 : index
    %c0_15 = arith.constant 0 : index
    %13 = vector.load %arg4[%c0_13, %c0_14, %c0_15] : memref<3x1x128xf32, #tpu.memory_space<vmem>>, vector<3x1x128xf32>
    %14 = vector.broadcast %13 : vector<3x1x128xf32> to vector<3x8x128xf32>
    %15 = arith.addf %12, %14 : vector<3x8x128xf32>
    %cst_16 = arith.constant 0.00999999977 : f32
    %16 = vector.broadcast %cst_16 : f32 to vector<3x8x128xf32>
    %17 = arith.mulf %16, %15 : vector<3x8x128xf32>
    %18 = arith.maximumf %15, %17 : vector<3x8x128xf32>
    %19 = arith.truncf %18 : vector<3x8x128xf32> to vector<3x8x128xbf16>
    %c0_17 = arith.constant 0 : index
    %c0_18 = arith.constant 0 : index
    %c0_19 = arith.constant 0 : index
    %20 = vector.load %arg5[%c0_17, %c0_18, %c0_19] : memref<3x128x5xbf16, #tpu.memory_space<vmem>>, vector<3x128x5xbf16>
    "tpu.trace_start"() <{level = 10 : i32, message = "abi,aio->abo"}> : () -> ()
    %cst_20 = arith.constant dense<0.000000e+00> : vector<3x8x5xf32>
    %21 = tpu.matmul %19, %20, %cst_20 {dimension_numbers = #tpu.dot_dimension_numbers<[2], [1], [1], [2], [0, 0, 0, 1, 1, 2], [0], [0]>} : vector<3x8x128xbf16>, vector<3x128x5xbf16>, vector<3x8x5xf32> -> vector<3x8x5xf32>
    "tpu.trace_stop"() : () -> ()
    %c0_21 = arith.constant 0 : index
    %c0_22 = arith.constant 0 : index
    %c0_23 = arith.constant 0 : index
    %22 = vector.load %arg6[%c0_21, %c0_22, %c0_23] : memref<3x1x5xf32, #tpu.memory_space<vmem>>, vector<3x1x5xf32>
    %23 = vector.broadcast %22 : vector<3x1x5xf32> to vector<3x8x5xf32>
    %24 = arith.addf %21, %23 : vector<3x8x5xf32>
    %c0_24 = arith.constant 0 : index
    %c0_25 = arith.constant 0 : index
    %c0_26 = arith.constant 0 : index
    %25 = vector.load %arg7[%c0_24, %c0_25, %c0_26] : memref<3x8x5xf32, #tpu.memory_space<vmem>>, vector<3x8x5xf32>
    tpu.vector_store %arg7[%c0_24, %c0_25, %c0_26], %24 {strides = array<i32>} : memref<3x8x5xf32, #tpu.memory_space<vmem>>, vector<3x8x5xf32>,
    return
  }
}

</mosaic_0001>

<llo_original>
// kernel: iqnet_forward.1
$region0: #{iqnet_forward.1}
  #allocation0 [shape = 'u32[]', space=smem, size = 0x4, offset = 0x4, fixed_abs, tag = 'smem constant byte address 0x4 - core index']
  #allocation1 [shape = 'u32[144,128]{1,0:T(1,128)}', space=vmem, size = 0x12000, scoped, tag = 'internal scratch']
  %s0 = inlined_call_operand.vmem [shape: f32[3,8,32], index: 0, kind: input, shape index: {}]
  %s1 = inlined_call_operand.hbm [shape: bf16[3,32,128], index: 1, kind: input, shape index: {}]
  %s2 = inlined_call_operand.vmem [shape: f32[3,1,128], index: 2, kind: input, shape index: {}]
  %s3 = inlined_call_operand.vmem [shape: bf16[3,128,128], index: 3, kind: input, shape index: {}]
  %s4 = inlined_call_operand.hbm [shape: f32[3,1,128], index: 4, kind: input, shape index: {}]
  %s5 = inlined_call_operand.vmem [shape: bf16[3,128,5], index: 5, kind: input, shape index: {}]
  %s6 = inlined_call_operand.hbm [shape: f32[3,1,5], index: 6, kind: input, shape index: {}]
  %s7 = inlined_call_operand.vmem [shape: f32[3,8,5], index: 7, kind: output, shape index: {}]
  %s8 = sld [smem:[#allocation0]]
  $region50: #{iqnet_forward.1} parent=0
    _
  %s10 = ssub.s32 1, %s8
  %s11 = scalar_select 0, %s10, %s8
  $region1: #{iqnet_forward.1} parent=0
    #allocation2 [shape = 'u8[24576]{0}', space=vmem, size = 0x6000, scoped, tag = 'input window, operand 1, single buffered']
    #allocation3 [shape = 's32[1]{0}', space=sflag, size = 0x4, scoped, tag = 'scoped memory for iqnet_forward.1']
    #allocation4 [shape = 'u8[1536]{0}', space=vmem, size = 0x800, scoped, tag = 'input window, operand 4, single buffered']
    #allocation5 [shape = 's32[1]{0}', space=sflag, size = 0x4, scoped, tag = 'scoped memory for iqnet_forward.1']
    #allocation6 [shape = 'u8[1536]{0}', space=vmem, size = 0x800, scoped, tag = 'input window, operand 6, single buffered']
    %12 = vsyncpa [#allocation3], 0
    %13 = vsyncpa [#allocation5], 0
    // Predicated region
    $region2: #{iqnet_forward.1} parent=1 // pred_check
      _
    $region3: #{iqnet_forward.1} parent=1 // pred_check_branch
      %15 = sbr.rel (0) target = $region5
    $region4: #{iqnet_forward.1} parent=1 // pred_region
      _
    $region5: #{iqnet_forward.1} parent=1 // pred_fallthru
      _
    // Predicated region
    $region6: #{iqnet_forward.1} parent=1 // pred_check
      _
    $region7: #{iqnet_forward.1} parent=1 // pred_check_branch
      %17 = sbr.rel (0) target = $region9
    $region8: #{iqnet_forward.1} parent=1 // pred_region
      %s19 = ssub.s32 768, 768
      %20 = vsyncadd [#allocation3], %s19
      %s21 = sshll.u32 [#allocation2], 4
      %s22 = int_to_ptr.vmem [resolvable:$true] %s21
      %27 = dma.hbm_to_vmem [thread:$0]  %s1, 768, %s22, [#allocation3], 64, 64, 4
    $region9: #{iqnet_forward.1} parent=1 // pred_fallthru
      _
    // Predicated region
    $region10: #{iqnet_forward.1} parent=1 // pred_check
      _
    $region11: #{iqnet_forward.1} parent=1 // pred_check_branch
      %29 = sbr.rel (0) target = $region13
    $region12: #{iqnet_forward.1} parent=1 // pred_region
      _
    $region13: #{iqnet_forward.1} parent=1 // pred_fallthru
      _
    // Predicated region
    $region14: #{iqnet_forward.1} parent=1 // pred_check
      _
    $region15: #{iqnet_forward.1} parent=1 // pred_check_branch
      %31 = sbr.rel (0) target = $region17
    $region16: #{iqnet_forward.1} parent=1 // pred_region
      _
    $region17: #{iqnet_forward.1} parent=1 // pred_fallthru
      _
    // Predicated region
    $region18: #{iqnet_forward.1} parent=1 // pred_check
      _
    $region19: #{iqnet_forward.1} parent=1 // pred_check_branch
      %33 = sbr.rel (0) target = $region21
    $region20: #{iqnet_forward.1} parent=1 // pred_region
      %s35 = ssub.s32 48, 48
      %36 = vsyncadd [#allocation5], %s35
      %s37 = sshll.u32 [#allocation4], 4
      %s38 = int_to_ptr.vmem [resolvable:$true] %s37
      %43 = dma.hbm_to_vmem [thread:$0]  %s4, 48, %s38, [#allocation5], 16, 16, 1
    $region21: #{iqnet_forward.1} parent=1 // pred_fallthru
      _
    // Predicated region
    $region22: #{iqnet_forward.1} parent=1 // pred_check
      _
    $region23: #{iqnet_forward.1} parent=1 // pred_check_branch
      %45 = sbr.rel (0) target = $region25
    $region24: #{iqnet_forward.1} parent=1 // pred_region
      _
    $region25: #{iqnet_forward.1} parent=1 // pred_fallthru
      _
    // Predicated region
    $region26: #{iqnet_forward.1} parent=1 // pred_check
      _
    $region27: #{iqnet_forward.1} parent=1 // pred_check_branch
      %47 = sbr.rel (0) target = $region29
    $region28: #{iqnet_forward.1} parent=1 // pred_region
      %s49 = ssub.s32 48, 48
      %50 = vsyncadd [#allocation5], %s49
      %s51 = sshll.u32 [#allocation6], 4
      %s52 = int_to_ptr.vmem [resolvable:$true] %s51
      %57 = dma.hbm_to_vmem [thread:$0]  %s6, 48, %s52, [#allocation5], 16, 16, 1
    $region29: #{iqnet_forward.1} parent=1 // pred_fallthru
      _
    // Predicated region
    $region30: #{iqnet_forward.1} parent=1 // pred_check
      _
    $region31: #{iqnet_forward.1} parent=1 // pred_check_branch
      %59 = sbr.rel (0) target = $region33
    $region32: #{iqnet_forward.1} parent=1 // pred_region
      %60 = dma.done [#allocation3], 768
    $region33: #{iqnet_forward.1} parent=1 // pred_fallthru
      _
    // Predicated region
    $region34: #{iqnet_forward.1} parent=1 // pred_check
      _
    $region35: #{iqnet_forward.1} parent=1 // pred_check_branch
      %62 = sbr.rel (0) target = $region37
    $region36: #{iqnet_forward.1} parent=1 // pred_region
      %63 = dma.done [#allocation5], 48
    $region37: #{iqnet_forward.1} parent=1 // pred_fallthru
      _
    // Predicated region
    $region38: #{iqnet_forward.1} parent=1 // pred_check
      _
    $region39: #{iqnet_forward.1} parent=1 // pred_check_branch
      %65 = sbr.rel (0) target = $region41
    $region40: #{iqnet_forward.1} parent=1 // pred_region
      %66 = dma.done [#allocation5], 48
    $region41: #{iqnet_forward.1} parent=1 // pred_fallthru
      _
    %v68 = vld [vmem:[%s0] sm:$0xff]
    %v69 = vld [vmem:[%s0 + $0x8] sm:$0xff]
    %v70 = vld [vmem:[%s0 + $0x10] sm:$0xff]
    %v71 = vpack.c.bf16 %v68, %v68
    %v72 = vpack.c.bf16 %v69, %v69
    %v73 = vpack.c.bf16 %v70, %v70
    %v74 = vld [vmem:[#allocation2] sm:$0xf]
    %v75 = vld [vmem:[#allocation2 + $0x4] sm:$0xf]
    %v76 = vld [vmem:[#allocation2 + $0x8] sm:$0xf]
    %v77 = vld [vmem:[#allocation2 + $0xc] sm:$0xf]
    %v78 = vld [vmem:[#allocation2 + $0x10] sm:$0xf]
    %v79 = vld [vmem:[#allocation2 + $0x14] sm:$0xf]
    %v80 = vld [vmem:[#allocation2 + $0x18] sm:$0xf]
    %v81 = vld [vmem:[#allocation2 + $0x1c] sm:$0xf]
    %v82 = vld [vmem:[#allocation2 + $0x20] sm:$0xf]
    %v83 = vld [vmem:[#allocation2 + $0x24] sm:$0xf]
    %v84 = vld [vmem:[#allocation2 + $0x28] sm:$0xf]
    %v85 = vld [vmem:[#allocation2 + $0x2c] sm:$0xf]
    %v86 = vld [vmem:[%s2] sm:$0x1]
    %v87 = vld [vmem:[%s2 + $0x1] sm:$0x1]
    %v88 = vld [vmem:[%s2 + $0x2] sm:$0x1]
    %v92 = vlaneseq
    %v93 = vshrl.u32 %v92, 7
    %v94 = vsub.s32 0, %v93
    %v95 = vrot.slane %v86, %v94
    %v96 = vlaneseq
    %v97 = vshrl.u32 %v96, 7
    %v98 = vsub.s32 0, %v97
    %v99 = vrot.slane %v87, %v98
    %v100 = vlaneseq
    %v101 = vshrl.u32 %v100, 7
    %v102 = vsub.s32 0, %v101
    %v103 = vrot.slane %v88, %v102
    %v111 = vunpack.c.l.b16 %v74
    %v112 = vunpack.c.l.b16 %v75
    %v113 = vunpack.c.l.b16 %v76
    %v114 = vunpack.c.l.b16 %v77
    %v115 = vpack.c.b16 %v112, %v111
    %v116 = vpack.c.b16 %v114, %v113
    %vm119 = vcmask 261120
    %v121 = vsel %vm119, %v71, 0
    %123 = vmatprep.subr.bf16.mxu0 0
    %124 = vmatpush1.bf16.msra.mxu0 %v115
    %125 = vmatprep.subr.bf16.mxu0 0
    %126 = vmatpush1.bf16.msra.mxu0 %v116
    %127 = vmatprep.subr.bf16.mxu0 0
    %128 = vmatpush1.bf16.msra.mxu0 0
    %129 = vmatprep.subr.bf16.mxu0 0
    %130 = vmatpush1.bf16.msra.mxu0 0
    %131 = vmatprep.subr.bf16.mxu0 0
    %132 = vmatpush1.bf16.msra.mxu0 0
    %133 = vmatprep.subr.bf16.mxu0 0
    %134 = vmatpush1.bf16.msra.mxu0 0
    %135 = vmatprep.subr.bf16.mxu0 0
    %136 = vmatpush1.bf16.msra.mxu0 0
    %137 = vmatprep.subr.bf16.mxu0 0
    %138 = vmatpush1.bf16.msra.mxu0 0
    %139 = vmatprep.subr.bf16.mxu0 0
    %140 = vmatpush1.bf16.msra.mxu0 0
    %141 = vmatprep.subr.bf16.mxu0 0
    %142 = vmatpush1.bf16.msra.mxu0 0
    %143 = vmatprep.subr.bf16.mxu0 0
    %144 = vmatpush1.bf16.msra.mxu0 0
    %145 = vmatprep.subr.bf16.mxu0 0
    %146 = vmatpush1.bf16.msra.mxu0 0
    %147 = vmatprep.subr.bf16.mxu0 0
    %148 = vmatpush1.bf16.msra.mxu0 0
    %149 = vmatprep.subr.bf16.mxu0 0
    %150 = vmatpush1.bf16.msra.mxu0 0
    %151 = vmatprep.subr.bf16.mxu0 0
    %152 = vmatpush1.bf16.msra.mxu0 0
    %153 = vmatprep.subr.bf16.mxu0 0
    %154 = vmatpush1.bf16.msra.mxu0 0
    %155 = vmatprep.mubr.bf16.mxu0 0
    %156 = vmatmul.mubr.bf16.gmra.mrb[0].mxu0 %v121
    %v157 = vpop.f32.mrb[0].mxu0
    %v158 = vadd.f32 %v95, %v157
    %v159 = vpop.f32.mrb[0].mxu0
    %v160 = vpop.f32.mrb[0].mxu0
    %v161 = vpop.f32.mrb[0].mxu0
    %162 = vdwg.mxu0
    %v167 = vunpack.c.l.b16 %v78
    %v168 = vunpack.c.l.b16 %v79
    %v169 = vunpack.c.l.b16 %v80
    %v170 = vunpack.c.l.b16 %v81
    %v171 = vpack.c.b16 %v168, %v167
    %v172 = vpack.c.b16 %v170, %v169
    %v176 = vsel %vm119, %v72, 0
    %178 = vmatprep.subr.bf16.mxu0 0
    %179 = vmatpush1.bf16.msra.mxu0 %v171
    %180 = vmatprep.subr.bf16.mxu0 0
    %181 = vmatpush1.bf16.msra.mxu0 %v172
    %182 = vmatprep.subr.bf16.mxu0 0
    %183 = vmatpush1.bf16.msra.mxu0 0
    %184 = vmatprep.subr.bf16.mxu0 0
    %185 = vmatpush1.bf16.msra.mxu0 0
    %186 = vmatprep.subr.bf16.mxu0 0
    %187 = vmatpush1.bf16.msra.mxu0 0
    %188 = vmatprep.subr.bf16.mxu0 0
    %189 = vmatpush1.bf16.msra.mxu0 0
    %190 = vmatprep.subr.bf16.mxu0 0
    %191 = vmatpush1.bf16.msra.mxu0 0
    %192 = vmatprep.subr.bf16.mxu0 0
    %193 = vmatpush1.bf16.msra.mxu0 0
    %194 = vmatprep.subr.bf16.mxu0 0
    %195 = vmatpush1.bf16.msra.mxu0 0
    %196 = vmatprep.subr.bf16.mxu0 0
    %197 = vmatpush1.bf16.msra.mxu0 0
    %198 = vmatprep.subr.bf16.mxu0 0
    %199 = vmatpush1.bf16.msra.mxu0 0
    %200 = vmatprep.subr.bf16.mxu0 0
    %201 = vmatpush1.bf16.msra.mxu0 0
    %202 = vmatprep.subr.bf16.mxu0 0
    %203 = vmatpush1.bf16.msra.mxu0 0
    %204 = vmatprep.subr.bf16.mxu0 0
    %205 = vmatpush1.bf16.msra.mxu0 0
    %206 = vmatprep.subr.bf16.mxu0 0
    %207 = vmatpush1.bf16.msra.mxu0 0
    %208 = vmatprep.subr.bf16.mxu0 0
    %209 = vmatpush1.bf16.msra.mxu0 0
    %210 = vmatprep.mubr.bf16.mxu0 0
    %211 = vmatmul.mubr.bf16.gmra.mrb[0].mxu0 %v176
    %v212 = vpop.f32.mrb[0].mxu0
    %v213 = vadd.f32 %v99, %v212
    %v214 = vpop.f32.mrb[0].mxu0
    %v215 = vpop.f32.mrb[0].mxu0
    %v216 = vpop.f32.mrb[0].mxu0
    %217 = vdwg.mxu0
    %v222 = vunpack.c.l.b16 %v82
    %v223 = vunpack.c.l.b16 %v83
    %v224 = vunpack.c.l.b16 %v84
    %v225 = vunpack.c.l.b16 %v85
    %v226 = vpack.c.b16 %v223, %v222
    %v227 = vpack.c.b16 %v225, %v224
    %v231 = vsel %vm119, %v73, 0
    %233 = vmatprep.subr.bf16.mxu0 0
    %234 = vmatpush1.bf16.msra.mxu0 %v226
    %235 = vmatprep.subr.bf16.mxu0 0
    %236 = vmatpush1.bf16.msra.mxu0 %v227
    %237 = vmatprep.subr.bf16.mxu0 0
    %238 = vmatpush1.bf16.msra.mxu0 0
    %239 = vmatprep.subr.bf16.mxu0 0
    %240 = vmatpush1.bf16.msra.mxu0 0
    %241 = vmatprep.subr.bf16.mxu0 0
    %242 = vmatpush1.bf16.msra.mxu0 0
    %243 = vmatprep.subr.bf16.mxu0 0
    %244 = vmatpush1.bf16.msra.mxu0 0
    %245 = vmatprep.subr.bf16.mxu0 0
    %246 = vmatpush1.bf16.msra.mxu0 0
    %247 = vmatprep.subr.bf16.mxu0 0
    %248 = vmatpush1.bf16.msra.mxu0 0
    %249 = vmatprep.subr.bf16.mxu0 0
    %250 = vmatpush1.bf16.msra.mxu0 0
    %251 = vmatprep.subr.bf16.mxu0 0
    %252 = vmatpush1.bf16.msra.mxu0 0
    %253 = vmatprep.subr.bf16.mxu0 0
    %254 = vmatpush1.bf16.msra.mxu0 0
    %255 = vmatprep.subr.bf16.mxu0 0
    %256 = vmatpush1.bf16.msra.mxu0 0
    %257 = vmatprep.subr.bf16.mxu0 0
    %258 = vmatpush1.bf16.msra.mxu0 0
    %259 = vmatprep.subr.bf16.mxu0 0
    %260 = vmatpush1.bf16.msra.mxu0 0
    %261 = vmatprep.subr.bf16.mxu0 0
    %262 = vmatpush1.bf16.msra.mxu0 0
    %263 = vmatprep.subr.bf16.mxu0 0
    %264 = vmatpush1.bf16.msra.mxu0 0
    %265 = vmatprep.mubr.bf16.mxu0 0
    %266 = vmatmul.mubr.bf16.gmra.mrb[0].mxu0 %v231
    %v267 = vpop.f32.mrb[0].mxu0
    %v268 = vadd.f32 %v103, %v267
    %v269 = vpop.f32.mrb[0].mxu0
    %v270 = vpop.f32.mrb[0].mxu0
    %v271 = vpop.f32.mrb[0].mxu0
    %272 = vdwg.mxu0
    %v273 = vmul.f32 %v158, 0.01
    %v274 = vmul.f32 %v213, 0.01
    %v275 = vmul.f32 %v268, 0.01
    %v276 = vmax.f32 %v158, %v273
    %v277 = vmax.f32 %v213, %v274
    %v278 = vmax.f32 %v268, %v275
    %v279 = vpack.c.bf16 %v276, %v276
    %v280 = vpack.c.bf16 %v277, %v277
    %v281 = vpack.c.bf16 %v278, %v278
    %v282 = vld [vmem:[%s3] sm:$0xf]
    %v283 = vld [vmem:[%s3 + $0x4] sm:$0xf]
    %v284 = vld [vmem:[%s3 + $0x8] sm:$0xf]
    %v285 = vld [vmem:[%s3 + $0xc] sm:$0xf]
    %v286 = vld [vmem:[%s3 + $0x10] sm:$0xf]
    %v287 = vld [vmem:[%s3 + $0x14] sm:$0xf]
    %v288 = vld [vmem:[%s3 + $0x18] sm:$0xf]
    %v289 = vld [vmem:[%s3 + $0x1c] sm:$0xf]
    %v290 = vld [vmem:[%s3 + $0x20] sm:$0xf]
    %v291 = vld [vmem:[%s3 + $0x24] sm:$0xf]
    %v292 = vld [vmem:[%s3 + $0x28] sm:$0xf]
    %v293 = vld [vmem:[%s3 + $0x2c] sm:$0xf]
    %v294 = vld [vmem:[%s3 + $0x30] sm:$0xf]
    %v295 = vld [vmem:[%s3 + $0x34] sm:$0xf]
    %v296 = vld [vmem:[%s3 + $0x38] sm:$0xf]
    %v297 = vld [vmem:[%s3 + $0x3c] sm:$0xf]
    %v298 = vld [vmem:[%s3 + $0x40] sm:$0xf]
    %v299 = vld [vmem:[%s3 + $0x44] sm:$0xf]
    %v300 = vld [vmem:[%s3 + $0x48] sm:$0xf]
    %v301 = vld [vmem:[%s3 + $0x4c] sm:$0xf]
    %v302 = vld [vmem:[%s3 + $0x50] sm:$0xf]
    %v303 = vld [vmem:[%s3 + $0x54] sm:$0xf]
    %v304 = vld [vmem:[%s3 + $0x58] sm:$0xf]
    %v305 = vld [vmem:[%s3 + $0x5c] sm:$0xf]
    %v306 = vld [vmem:[%s3 + $0x60] sm:$0xf]
    %v307 = vld [vmem:[%s3 + $0x64] sm:$0xf]
    %v308 = vld [vmem:[%s3 + $0x68] sm:$0xf]
    %v309 = vld [vmem:[%s3 + $0x6c] sm:$0xf]
    %v310 = vld [vmem:[%s3 + $0x70] sm:$0xf]
    %v311 = vld [vmem:[%s3 + $0x74] sm:$0xf]
    %v312 = vld [vmem:[%s3 + $0x78] sm:$0xf]
    %v313 = vld [vmem:[%s3 + $0x7c] sm:$0xf]
    %v314 = vld [vmem:[%s3 + $0x80] sm:$0xf]
    %v315 = vld [vmem:[%s3 + $0x84] sm:$0xf]
    %v316 = vld [vmem:[%s3 + $0x88] sm:$0xf]
    %v317 = vld [vmem:[%s3 + $0x8c] sm:$0xf]
    %v318 = vld [vmem:[%s3 + $0x90] sm:$0xf]
    %v319 = vld [vmem:[%s3 + $0x94] sm:$0xf]
    %v320 = vld [vmem:[%s3 + $0x98] sm:$0xf]
    %v321 = vld [vmem:[%s3 + $0x9c] sm:$0xf]
    %v322 = vld [vmem:[%s3 + $0xa0] sm:$0xf]
    %v323 = vld [vmem:[%s3 + $0xa4] sm:$0xf]
    %v324 = vld [vmem:[%s3 + $0xa8] sm:$0xf]
    %v325 = vld [vmem:[%s3 + $0xac] sm:$0xf]
    %v326 = vld [vmem:[%s3 + $0xb0] sm:$0xf]
    %v327 = vld [vmem:[%s3 + $0xb4] sm:$0xf]
    %v328 = vld [vmem:[%s3 + $0xb8] sm:$0xf]
    %v329 = vld [vmem:[%s3 + $0xbc] sm:$0xf]
    %v330 = vld [vmem:[#allocation4] sm:$0x1]
    %v331 = vld [vmem:[#allocation4 + $0x1] sm:$0x1]
    %v332 = vld [vmem:[#allocation4 + $0x2] sm:$0x1]
    %v336 = vlaneseq
    %v337 = vshrl.u32 %v336, 7
    %v338 = vsub.s32 0, %v337
    %v339 = vrot.slane %v330, %v338
    %v340 = vlaneseq
    %v341 = vshrl.u32 %v340, 7
    %v342 = vsub.s32 0, %v341
    %v343 = vrot.slane %v331, %v342
    %v344 = vlaneseq
    %v345 = vshrl.u32 %v344, 7
    %v346 = vsub.s32 0, %v345
    %v347 = vrot.slane %v332, %v346
    %v367 = vunpack.c.l.b16 %v282
    %v368 = vunpack.c.l.b16 %v283
    %v369 = vunpack.c.l.b16 %v284
    %v370 = vunpack.c.l.b16 %v285
    %v371 = vunpack.c.l.b16 %v286
    %v372 = vunpack.c.l.b16 %v287
    %v373 = vunpack.c.l.b16 %v288
    %v374 = vunpack.c.l.b16 %v289
    %v375 = vunpack.c.l.b16 %v290
    %v376 = vunpack.c.l.b16 %v291
    %v377 = vunpack.c.l.b16 %v292
    %v378 = vunpack.c.l.b16 %v293
    %v379 = vunpack.c.l.b16 %v294
    %v380 = vunpack.c.l.b16 %v295
    %v381 = vunpack.c.l.b16 %v296
    %v382 = vunpack.c.l.b16 %v297
    %v383 = vpack.c.b16 %v368, %v367
    %v384 = vpack.c.b16 %v370, %v369
    %v385 = vpack.c.b16 %v372, %v371
    %v386 = vpack.c.b16 %v374, %v373
    %v387 = vpack.c.b16 %v376, %v375
    %v388 = vpack.c.b16 %v378, %v377
    %v389 = vpack.c.b16 %v380, %v379
    %v390 = vpack.c.b16 %v382, %v381
    %399 = vmatprep.subr.bf16.mxu0 0
    %400 = vmatpush1.bf16.msra.mxu0 %v383
    %401 = vmatprep.subr.bf16.mxu0 0
    %402 = vmatpush1.bf16.msra.mxu0 %v384
    %403 = vmatprep.subr.bf16.mxu0 0
    %404 = vmatpush1.bf16.msra.mxu0 %v385
    %405 = vmatprep.subr.bf16.mxu0 0
    %406 = vmatpush1.bf16.msra.mxu0 %v386
    %407 = vmatprep.subr.bf16.mxu0 0
    %408 = vmatpush1.bf16.msra.mxu0 %v387
    %409 = vmatprep.subr.bf16.mxu0 0
    %410 = vmatpush1.bf16.msra.mxu0 %v388
    %411 = vmatprep.subr.bf16.mxu0 0
    %412 = vmatpush1.bf16.msra.mxu0 %v389
    %413 = vmatprep.subr.bf16.mxu0 0
    %414 = vmatpush1.bf16.msra.mxu0 %v390
    %415 = vmatprep.subr.bf16.mxu0 0
    %416 = vmatpush1.bf16.msra.mxu0 0
    %417 = vmatprep.subr.bf16.mxu0 0
    %418 = vmatpush1.bf16.msra.mxu0 0
    %419 = vmatprep.subr.bf16.mxu0 0
    %420 = vmatpush1.bf16.msra.mxu0 0
    %421 = vmatprep.subr.bf16.mxu0 0
    %422 = vmatpush1.bf16.msra.mxu0 0
    %423 = vmatprep.subr.bf16.mxu0 0
    %424 = vmatpush1.bf16.msra.mxu0 0
    %425 = vmatprep.subr.bf16.mxu0 0
    %426 = vmatpush1.bf16.msra.mxu0 0
    %427 = vmatprep.subr.bf16.mxu0 0
    %428 = vmatpush1.bf16.msra.mxu0 0
    %429 = vmatprep.subr.bf16.mxu0 0
    %430 = vmatpush1.bf16.msra.mxu0 0
    %431 = vmatprep.mubr.bf16.mxu0 0
    %432 = vmatmul.mubr.bf16.gmra.mrb[0].mxu0 %v279
    %v433 = vpop.f32.mrb[0].mxu0
    %v434 = vadd.f32 %v339, %v433
    %v435 = vpop.f32.mrb[0].mxu0
    %v436 = vpop.f32.mrb[0].mxu0
    %v437 = vpop.f32.mrb[0].mxu0
    %438 = vdwg.mxu0
    %v455 = vunpack.c.l.b16 %v298
    %v456 = vunpack.c.l.b16 %v299
    %v457 = vunpack.c.l.b16 %v300
    %v458 = vunpack.c.l.b16 %v301
    %v459 = vunpack.c.l.b16 %v302
    %v460 = vunpack.c.l.b16 %v303
    %v461 = vunpack.c.l.b16 %v304
    %v462 = vunpack.c.l.b16 %v305
    %v463 = vunpack.c.l.b16 %v306
    %v464 = vunpack.c.l.b16 %v307
    %v465 = vunpack.c.l.b16 %v308
    %v466 = vunpack.c.l.b16 %v309
    %v467 = vunpack.c.l.b16 %v310
    %v468 = vunpack.c.l.b16 %v311
    %v469 = vunpack.c.l.b16 %v312
    %v470 = vunpack.c.l.b16 %v313
    %v471 = vpack.c.b16 %v456, %v455
    %v472 = vpack.c.b16 %v458, %v457
    %v473 = vpack.c.b16 %v460, %v459
    %v474 = vpack.c.b16 %v462, %v461
    %v475 = vpack.c.b16 %v464, %v463
    %v476 = vpack.c.b16 %v466, %v465
    %v477 = vpack.c.b16 %v468, %v467
    %v478 = vpack.c.b16 %v470, %v469
    %487 = vmatprep.subr.bf16.mxu0 0
    %488 = vmatpush1.bf16.msra.mxu0 %v471
    %489 = vmatprep.subr.bf16.mxu0 0
    %490 = vmatpush1.bf16.msra.mxu0 %v472
    %491 = vmatprep.subr.bf16.mxu0 0
    %492 = vmatpush1.bf16.msra.mxu0 %v473
    %493 = vmatprep.subr.bf16.mxu0 0
    %494 = vmatpush1.bf16.msra.mxu0 %v474
    %495 = vmatprep.subr.bf16.mxu0 0
    %496 = vmatpush1.bf16.msra.mxu0 %v475
    %497 = vmatprep.subr.bf16.mxu0 0
    %498 = vmatpush1.bf16.msra.mxu0 %v476
    %499 = vmatprep.subr.bf16.mxu0 0
    %500 = vmatpush1.bf16.msra.mxu0 %v477
    %501 = vmatprep.subr.bf16.mxu0 0
    %502 = vmatpush1.bf16.msra.mxu0 %v478
    %503 = vmatprep.subr.bf16.mxu0 0
    %504 = vmatpush1.bf16.msra.mxu0 0
    %505 = vmatprep.subr.bf16.mxu0 0
    %506 = vmatpush1.bf16.msra.mxu0 0
    %507 = vmatprep.subr.bf16.mxu0 0
    %508 = vmatpush1.bf16.msra.mxu0 0
    %509 = vmatprep.subr.bf16.mxu0 0
    %510 = vmatpush1.bf16.msra.mxu0 0
    %511 = vmatprep.subr.bf16.mxu0 0
    %512 = vmatpush1.bf16.msra.mxu0 0
    %513 = vmatprep.subr.bf16.mxu0 0
    %514 = vmatpush1.bf16.msra.mxu0 0
    %515 = vmatprep.subr.bf16.mxu0 0
    %516 = vmatpush1.bf16.msra.mxu0 0
    %517 = vmatprep.subr.bf16.mxu0 0
    %518 = vmatpush1.bf16.msra.mxu0 0
    %519 = vmatprep.mubr.bf16.mxu0 0
    %520 = vmatmul.mubr.bf16.gmra.mrb[0].mxu0 %v280
    %v521 = vpop.f32.mrb[0].mxu0
    %v522 = vadd.f32 %v343, %v521
    %v523 = vpop.f32.mrb[0].mxu0
    %v524 = vpop.f32.mrb[0].mxu0
    %v525 = vpop.f32.mrb[0].mxu0
    %526 = vdwg.mxu0
    %v543 = vunpack.c.l.b16 %v314
    %v544 = vunpack.c.l.b16 %v315
    %v545 = vunpack.c.l.b16 %v316
    %v546 = vunpack.c.l.b16 %v317
    %v547 = vunpack.c.l.b16 %v318
    %v548 = vunpack.c.l.b16 %v319
    %v549 = vunpack.c.l.b16 %v320
    %v550 = vunpack.c.l.b16 %v321
    %v551 = vunpack.c.l.b16 %v322
    %v552 = vunpack.c.l.b16 %v323
    %v553 = vunpack.c.l.b16 %v324
    %v554 = vunpack.c.l.b16 %v325
    %v555 = vunpack.c.l.b16 %v326
    %v556 = vunpack.c.l.b16 %v327
    %v557 = vunpack.c.l.b16 %v328
    %v558 = vunpack.c.l.b16 %v329
    %v559 = vpack.c.b16 %v544, %v543
    %v560 = vpack.c.b16 %v546, %v545
    %v561 = vpack.c.b16 %v548, %v547
    %v562 = vpack.c.b16 %v550, %v549
    %v563 = vpack.c.b16 %v552, %v551
    %v564 = vpack.c.b16 %v554, %v553
    %v565 = vpack.c.b16 %v556, %v555
    %v566 = vpack.c.b16 %v558, %v557
    %575 = vmatprep.subr.bf16.mxu0 0
    %576 = vmatpush1.bf16.msra.mxu0 %v559
    %577 = vmatprep.subr.bf16.mxu0 0
    %578 = vmatpush1.bf16.msra.mxu0 %v560
    %579 = vmatprep.subr.bf16.mxu0 0
    %580 = vmatpush1.bf16.msra.mxu0 %v561
    %581 = vmatprep.subr.bf16.mxu0 0
    %582 = vmatpush1.bf16.msra.mxu0 %v562
    %583 = vmatprep.subr.bf16.mxu0 0
    %584 = vmatpush1.bf16.msra.mxu0 %v563
    %585 = vmatprep.subr.bf16.mxu0 0
    %586 = vmatpush1.bf16.msra.mxu0 %v564
    %587 = vmatprep.subr.bf16.mxu0 0
    %588 = vmatpush1.bf16.msra.mxu0 %v565
    %589 = vmatprep.subr.bf16.mxu0 0
    %590 = vmatpush1.bf16.msra.mxu0 %v566
    %591 = vmatprep.subr.bf16.mxu0 0
    %592 = vmatpush1.bf16.msra.mxu0 0
    %593 = vmatprep.subr.bf16.mxu0 0
    %594 = vmatpush1.bf16.msra.mxu0 0
    %595 = vmatprep.subr.bf16.mxu0 0
    %596 = vmatpush1.bf16.msra.mxu0 0
    %597 = vmatprep.subr.bf16.mxu0 0
    %598 = vmatpush1.bf16.msra.mxu0 0
    %599 = vmatprep.subr.bf16.mxu0 0
    %600 = vmatpush1.bf16.msra.mxu0 0
    %601 = vmatprep.subr.bf16.mxu0 0
    %602 = vmatpush1.bf16.msra.mxu0 0
    %603 = vmatprep.subr.bf16.mxu0 0
    %604 = vmatpush1.bf16.msra.mxu0 0
    %605 = vmatprep.subr.bf16.mxu0 0
    %606 = vmatpush1.bf16.msra.mxu0 0
    %607 = vmatprep.mubr.bf16.mxu0 0
    %608 = vmatmul.mubr.bf16.gmra.mrb[0].mxu0 %v281
    %v609 = vpop.f32.mrb[0].mxu0
    %v610 = vadd.f32 %v347, %v609
    %v611 = vpop.f32.mrb[0].mxu0
    %v612 = vpop.f32.mrb[0].mxu0
    %v613 = vpop.f32.mrb[0].mxu0
    %614 = vdwg.mxu0
    %v615 = vmul.f32 %v434, 0.01
    %v616 = vmul.f32 %v522, 0.01
    %v617 = vmul.f32 %v610, 0.01
    %v618 = vmax.f32 %v434, %v615
    %v619 = vmax.f32 %v522, %v616
    %v620 = vmax.f32 %v610, %v617
    %v621 = vpack.c.bf16 %v618, %v618
    %v622 = vpack.c.bf16 %v619, %v619
    %v623 = vpack.c.bf16 %v620, %v620
    %v624 = vld [vmem:[%s5] sm:$0xf]
    %v625 = vld [vmem:[%s5 + $0x4] sm:$0xf]
    %v626 = vld [vmem:[%s5 + $0x8] sm:$0xf]
    %v627 = vld [vmem:[%s5 + $0xc] sm:$0xf]
    %v628 = vld [vmem:[%s5 + $0x10] sm:$0xf]
    %v629 = vld [vmem:[%s5 + $0x14] sm:$0xf]
    %v630 = vld [vmem:[%s5 + $0x18] sm:$0xf]
    %v631 = vld [vmem:[%s5 + $0x1c] sm:$0xf]
    %v632 = vld [vmem:[%s5 + $0x20] sm:$0xf]
    %v633 = vld [vmem:[%s5 + $0x24] sm:$0xf]
    %v634 = vld [vmem:[%s5 + $0x28] sm:$0xf]
    %v635 = vld [vmem:[%s5 + $0x2c] sm:$0xf]
    %v636 = vld [vmem:[%s5 + $0x30] sm:$0xf]
    %v637 = vld [vmem:[%s5 + $0x34] sm:$0xf]
    %v638 = vld [vmem:[%s5 + $0x38] sm:$0xf]
    %v639 = vld [vmem:[%s5 + $0x3c] sm:$0xf]
    %v640 = vld [vmem:[%s5 + $0x40] sm:$0xf]
    %v641 = vld [vmem:[%s5 + $0x44] sm:$0xf]
    %v642 = vld [vmem:[%s5 + $0x48] sm:$0xf]
    %v643 = vld [vmem:[%s5 + $0x4c] sm:$0xf]
    %v644 = vld [vmem:[%s5 + $0x50] sm:$0xf]
    %v645 = vld [vmem:[%s5 + $0x54] sm:$0xf]
    %v646 = vld [vmem:[%s5 + $0x58] sm:$0xf]
    %v647 = vld [vmem:[%s5 + $0x5c] sm:$0xf]
    %v648 = vld [vmem:[%s5 + $0x60] sm:$0xf]
    %v649 = vld [vmem:[%s5 + $0x64] sm:$0xf]
    %v650 = vld [vmem:[%s5 + $0x68] sm:$0xf]
    %v651 = vld [vmem:[%s5 + $0x6c] sm:$0xf]
    %v652 = vld [vmem:[%s5 + $0x70] sm:$0xf]
    %v653 = vld [vmem:[%s5 + $0x74] sm:$0xf]
    %v654 = vld [vmem:[%s5 + $0x78] sm:$0xf]
    %v655 = vld [vmem:[%s5 + $0x7c] sm:$0xf]
    %v656 = vld [vmem:[%s5 + $0x80] sm:$0xf]
    %v657 = vld [vmem:[%s5 + $0x84] sm:$0xf]
    %v658 = vld [vmem:[%s5 + $0x88] sm:$0xf]
    %v659 = vld [vmem:[%s5 + $0x8c] sm:$0xf]
    %v660 = vld [vmem:[%s5 + $0x90] sm:$0xf]
    %v661 = vld [vmem:[%s5 + $0x94] sm:$0xf]
    %v662 = vld [vmem:[%s5 + $0x98] sm:$0xf]
    %v663 = vld [vmem:[%s5 + $0x9c] sm:$0xf]
    %v664 = vld [vmem:[%s5 + $0xa0] sm:$0xf]
    %v665 = vld [vmem:[%s5 + $0xa4] sm:$0xf]
    %v666 = vld [vmem:[%s5 + $0xa8] sm:$0xf]
    %v667 = vld [vmem:[%s5 + $0xac] sm:$0xf]
    %v668 = vld [vmem:[%s5 + $0xb0] sm:$0xf]
    %v669 = vld [vmem:[%s5 + $0xb4] sm:$0xf]
    %v670 = vld [vmem:[%s5 + $0xb8] sm:$0xf]
    %v671 = vld [vmem:[%s5 + $0xbc] sm:$0xf]
    %v672 = vld [vmem:[#allocation6] sm:$0x1]
    %v673 = vld [vmem:[#allocation6 + $0x1] sm:$0x1]
    %v674 = vld [vmem:[#allocation6 + $0x2] sm:$0x1]
    %v678 = vlaneseq
    %v679 = vshrl.u32 %v678, 7
    %v680 = vsub.s32 0, %v679
    %v681 = vrot.slane %v672, %v680
    %v682 = vlaneseq
    %v683 = vshrl.u32 %v682, 7
    %v684 = vsub.s32 0, %v683
    %v685 = vrot.slane %v673, %v684
    %v686 = vlaneseq
    %v687 = vshrl.u32 %v686, 7
    %v688 = vsub.s32 0, %v687
    %v689 = vrot.slane %v674, %v688
    %v709 = vunpack.c.l.b16 %v624
    %v710 = vunpack.c.l.b16 %v625
    %v711 = vunpack.c.l.b16 %v626
    %v712 = vunpack.c.l.b16 %v627
    %v713 = vunpack.c.l.b16 %v628
    %v714 = vunpack.c.l.b16 %v629
    %v715 = vunpack.c.l.b16 %v630
    %v716 = vunpack.c.l.b16 %v631
    %v717 = vunpack.c.l.b16 %v632
    %v718 = vunpack.c.l.b16 %v633
    %v719 = vunpack.c.l.b16 %v634
    %v720 = vunpack.c.l.b16 %v635
    %v721 = vunpack.c.l.b16 %v636
    %v722 = vunpack.c.l.b16 %v637
    %v723 = vunpack.c.l.b16 %v638
    %v724 = vunpack.c.l.b16 %v639
    %v725 = vpack.c.b16 %v710, %v709
    %v726 = vpack.c.b16 %v712, %v711
    %v727 = vpack.c.b16 %v714, %v713
    %v728 = vpack.c.b16 %v716, %v715
    %v729 = vpack.c.b16 %v718, %v717
    %v730 = vpack.c.b16 %v720, %v719
    %v731 = vpack.c.b16 %v722, %v721
    %v732 = vpack.c.b16 %v724, %v723
    %741 = vmatprep.subr.bf16.mxu0 0
    %742 = vmatpush1.bf16.msra.mxu0 %v725
    %743 = vmatprep.subr.bf16.mxu0 0
    %744 = vmatpush1.bf16.msra.mxu0 %v726
    %745 = vmatprep.subr.bf16.mxu0 0
    %746 = vmatpush1.bf16.msra.mxu0 %v727
    %747 = vmatprep.subr.bf16.mxu0 0
    %748 = vmatpush1.bf16.msra.mxu0 %v728
    %749 = vmatprep.subr.bf16.mxu0 0
    %750 = vmatpush1.bf16.msra.mxu0 %v729
    %751 = vmatprep.subr.bf16.mxu0 0
    %752 = vmatpush1.bf16.msra.mxu0 %v730
    %753 = vmatprep.subr.bf16.mxu0 0
    %754 = vmatpush1.bf16.msra.mxu0 %v731
    %755 = vmatprep.subr.bf16.mxu0 0
    %756 = vmatpush1.bf16.msra.mxu0 %v732
    %757 = vmatprep.subr.bf16.mxu0 0
    %758 = vmatpush1.bf16.msra.mxu0 0
    %759 = vmatprep.subr.bf16.mxu0 0
    %760 = vmatpush1.bf16.msra.mxu0 0
    %761 = vmatprep.subr.bf16.mxu0 0
    %762 = vmatpush1.bf16.msra.mxu0 0
    %763 = vmatprep.subr.bf16.mxu0 0
    %764 = vmatpush1.bf16.msra.mxu0 0
    %765 = vmatprep.subr.bf16.mxu0 0
    %766 = vmatpush1.bf16.msra.mxu0 0
    %767 = vmatprep.subr.bf16.mxu0 0
    %768 = vmatpush1.bf16.msra.mxu0 0
    %769 = vmatprep.subr.bf16.mxu0 0
    %770 = vmatpush1.bf16.msra.mxu0 0
    %771 = vmatprep.subr.bf16.mxu0 0
    %772 = vmatpush1.bf16.msra.mxu0 0
    %773 = vmatprep.mubr.bf16.mxu0 0
    %774 = vmatmul.mubr.bf16.gmra.mrb[0].mxu0 %v621
    %v775 = vpop.f32.mrb[0].mxu0
    %v776 = vadd.f32 %v681, %v775
    %v777 = vpop.f32.mrb[0].mxu0
    %v778 = vpop.f32.mrb[0].mxu0
    %v779 = vpop.f32.mrb[0].mxu0
    %780 = vdwg.mxu0
    %v797 = vunpack.c.l.b16 %v640
    %v798 = vunpack.c.l.b16 %v641
    %v799 = vunpack.c.l.b16 %v642
    %v800 = vunpack.c.l.b16 %v643
    %v801 = vunpack.c.l.b16 %v644
    %v802 = vunpack.c.l.b16 %v645
    %v803 = vunpack.c.l.b16 %v646
    %v804 = vunpack.c.l.b16 %v647
    %v805 = vunpack.c.l.b16 %v648
    %v806 = vunpack.c.l.b16 %v649
    %v807 = vunpack.c.l.b16 %v650
    %v808 = vunpack.c.l.b16 %v651
    %v809 = vunpack.c.l.b16 %v652
    %v810 = vunpack.c.l.b16 %v653
    %v811 = vunpack.c.l.b16 %v654
    %v812 = vunpack.c.l.b16 %v655
    %v813 = vpack.c.b16 %v798, %v797
    %v814 = vpack.c.b16 %v800, %v799
    %v815 = vpack.c.b16 %v802, %v801
    %v816 = vpack.c.b16 %v804, %v803
    %v817 = vpack.c.b16 %v806, %v805
    %v818 = vpack.c.b16 %v808, %v807
    %v819 = vpack.c.b16 %v810, %v809
    %v820 = vpack.c.b16 %v812, %v811
    %829 = vmatprep.subr.bf16.mxu0 0
    %830 = vmatpush1.bf16.msra.mxu0 %v813
    %831 = vmatprep.subr.bf16.mxu0 0
    %832 = vmatpush1.bf16.msra.mxu0 %v814
    %833 = vmatprep.subr.bf16.mxu0 0
    %834 = vmatpush1.bf16.msra.mxu0 %v815
    %835 = vmatprep.subr.bf16.mxu0 0
    %836 = vmatpush1.bf16.msra.mxu0 %v816
    %837 = vmatprep.subr.bf16.mxu0 0
    %838 = vmatpush1.bf16.msra.mxu0 %v817
    %839 = vmatprep.subr.bf16.mxu0 0
    %840 = vmatpush1.bf16.msra.mxu0 %v818
    %841 = vmatprep.subr.bf16.mxu0 0
    %842 = vmatpush1.bf16.msra.mxu0 %v819
    %843 = vmatprep.subr.bf16.mxu0 0
    %844 = vmatpush1.bf16.msra.mxu0 %v820
    %845 = vmatprep.subr.bf16.mxu0 0
    %846 = vmatpush1.bf16.msra.mxu0 0
    %847 = vmatprep.subr.bf16.mxu0 0
    %848 = vmatpush1.bf16.msra.mxu0 0
    %849 = vmatprep.subr.bf16.mxu0 0
    %850 = vmatpush1.bf16.msra.mxu0 0
    %851 = vmatprep.subr.bf16.mxu0 0
    %852 = vmatpush1.bf16.msra.mxu0 0
    %853 = vmatprep.subr.bf16.mxu0 0
    %854 = vmatpush1.bf16.msra.mxu0 0
    %855 = vmatprep.subr.bf16.mxu0 0
    %856 = vmatpush1.bf16.msra.mxu0 0
    %857 = vmatprep.subr.bf16.mxu0 0
    %858 = vmatpush1.bf16.msra.mxu0 0
    %859 = vmatprep.subr.bf16.mxu0 0
    %860 = vmatpush1.bf16.msra.mxu0 0
    %861 = vmatprep.mubr.bf16.mxu0 0
    %862 = vmatmul.mubr.bf16.gmra.mrb[0].mxu0 %v622
    %v863 = vpop.f32.mrb[0].mxu0
    %v864 = vadd.f32 %v685, %v863
    %v865 = vpop.f32.mrb[0].mxu0
    %v866 = vpop.f32.mrb[0].mxu0
    %v867 = vpop.f32.mrb[0].mxu0
    %868 = vdwg.mxu0
    %v885 = vunpack.c.l.b16 %v656
    %v886 = vunpack.c.l.b16 %v657
    %v887 = vunpack.c.l.b16 %v658
    %v888 = vunpack.c.l.b16 %v659
    %v889 = vunpack.c.l.b16 %v660
    %v890 = vunpack.c.l.b16 %v661
    %v891 = vunpack.c.l.b16 %v662
    %v892 = vunpack.c.l.b16 %v663
    %v893 = vunpack.c.l.b16 %v664
    %v894 = vunpack.c.l.b16 %v665
    %v895 = vunpack.c.l.b16 %v666
    %v896 = vunpack.c.l.b16 %v667
    %v897 = vunpack.c.l.b16 %v668
    %v898 = vunpack.c.l.b16 %v669
    %v899 = vunpack.c.l.b16 %v670
    %v900 = vunpack.c.l.b16 %v671
    %v901 = vpack.c.b16 %v886, %v885
    %v902 = vpack.c.b16 %v888, %v887
    %v903 = vpack.c.b16 %v890, %v889
    %v904 = vpack.c.b16 %v892, %v891
    %v905 = vpack.c.b16 %v894, %v893
    %v906 = vpack.c.b16 %v896, %v895
    %v907 = vpack.c.b16 %v898, %v897
    %v908 = vpack.c.b16 %v900, %v899
    %917 = vmatprep.subr.bf16.mxu0 0
    %918 = vmatpush1.bf16.msra.mxu0 %v901
    %919 = vmatprep.subr.bf16.mxu0 0
    %920 = vmatpush1.bf16.msra.mxu0 %v902
    %921 = vmatprep.subr.bf16.mxu0 0
    %922 = vmatpush1.bf16.msra.mxu0 %v903
    %923 = vmatprep.subr.bf16.mxu0 0
    %924 = vmatpush1.bf16.msra.mxu0 %v904
    %925 = vmatprep.subr.bf16.mxu0 0
    %926 = vmatpush1.bf16.msra.mxu0 %v905
    %927 = vmatprep.subr.bf16.mxu0 0
    %928 = vmatpush1.bf16.msra.mxu0 %v906
    %929 = vmatprep.subr.bf16.mxu0 0
    %930 = vmatpush1.bf16.msra.mxu0 %v907
    %931 = vmatprep.subr.bf16.mxu0 0
    %932 = vmatpush1.bf16.msra.mxu0 %v908
    %933 = vmatprep.subr.bf16.mxu0 0
    %934 = vmatpush1.bf16.msra.mxu0 0
    %935 = vmatprep.subr.bf16.mxu0 0
    %936 = vmatpush1.bf16.msra.mxu0 0
    %937 = vmatprep.subr.bf16.mxu0 0
    %938 = vmatpush1.bf16.msra.mxu0 0
    %939 = vmatprep.subr.bf16.mxu0 0
    %940 = vmatpush1.bf16.msra.mxu0 0
    %941 = vmatprep.subr.bf16.mxu0 0
    %942 = vmatpush1.bf16.msra.mxu0 0
    %943 = vmatprep.subr.bf16.mxu0 0
    %944 = vmatpush1.bf16.msra.mxu0 0
    %945 = vmatprep.subr.bf16.mxu0 0
    %946 = vmatpush1.bf16.msra.mxu0 0
    %947 = vmatprep.subr.bf16.mxu0 0
    %948 = vmatpush1.bf16.msra.mxu0 0
    %949 = vmatprep.mubr.bf16.mxu0 0
    %950 = vmatmul.mubr.bf16.gmra.mrb[0].mxu0 %v623
    %v951 = vpop.f32.mrb[0].mxu0
    %v952 = vadd.f32 %v689, %v951
    %v953 = vpop.f32.mrb[0].mxu0
    %v954 = vpop.f32.mrb[0].mxu0
    %v955 = vpop.f32.mrb[0].mxu0
    %956 = vdwg.mxu0
    %vm957 = vcmask 39936
    %958 = vst.msk [vmem:[%s7] sm:$0xff] %vm957, %v776
    %959 = vst.msk [vmem:[%s7 + $0x8] sm:$0xff] %vm957, %v864
    %960 = vst.msk [vmem:[%s7 + $0x10] sm:$0xff] %vm957, %v952
    // Predicated region
    $region42: #{iqnet_forward.1} parent=1 // pred_check
      _
    $region43: #{iqnet_forward.1} parent=1 // pred_check_branch
      %962 = sbr.rel (0) target = $region45
    $region44: #{iqnet_forward.1} parent=1 // pred_region
      _
    $region45: #{iqnet_forward.1} parent=1 // pred_fallthru
      _
    // Predicated region
    $region46: #{iqnet_forward.1} parent=1 // pred_check
      _
    $region47: #{iqnet_forward.1} parent=1 // pred_check_branch
      %964 = sbr.rel (0) target = $region49
    $region48: #{iqnet_forward.1} parent=1 // pred_region
      _
    $region49: #{iqnet_forward.1} parent=1 // pred_fallthru
      _
    %965 = vsyncpa [#allocation3], 1
    %966 = vsyncpa [#allocation5], 1

</llo_original>
